<compile_context>
chip_gen: v7x
topology: tpu7x:2x2x1
jax: 0.10.0
libtpu: 0.0.40
codegen_flags: <defaults>
</compile_context>

<pallas_src>
import functools

import jax
import jax.numpy as jnp
from jax.experimental import pallas as pl
from jax.experimental.pallas import tpu as pltpu


def _neg_fill(dtype):
    # PyTorch MaxPool2d pads with -inf (float only); use iinfo.min for ints.
    if jnp.issubdtype(dtype, jnp.floating):
        return jnp.asarray(-jnp.inf, dtype=dtype)
    return jnp.asarray(jnp.iinfo(dtype).min, dtype=dtype)


def _maxpool3x3_kernel(col_ref, row_ref, x_ref, o_ref, *, H, W):
    # x_ref/o_ref: (B, H*W) -- one flattened spatial plane per sublane row.
    # col_ref/row_ref: (1, H*W) int32 with w = flat % W and h = flat // W.
    x = x_ref[...]
    col = col_ref[...]
    row = row_ref[...]
    neg = _neg_fill(x.dtype)

    # ---- separable pass 1: 1x3 max along W (lane shifts by +-1) ----
    # left[f]  = x[h, w-1]  (invalid when w == 0)
    # right[f] = x[h, w+1]  (invalid when w == W-1)
    left = jnp.where(col == 0, neg, jnp.roll(x, 1, axis=1))
    right = jnp.where(col == W - 1, neg, jnp.roll(x, -1, axis=1))
    rmax = jnp.maximum(jnp.maximum(left, x), right)

    # ---- separable pass 2: 3x1 max along H (lane shifts by +-W) ----
    # up[f]   = rmax[h-1, w]  (invalid when h == 0)
    # down[f] = rmax[h+1, w]  (invalid when h == H-1)
    up = jnp.where(row == 0, neg, jnp.roll(rmax, W, axis=1))
    down = jnp.where(row == H - 1, neg, jnp.roll(rmax, -W, axis=1))
    o_ref[...] = jnp.maximum(jnp.maximum(up, rmax), down)


def _pick_block_planes(planes, hw, itemsize):
    """Planes per grid step: ~2 MiB block, sublane-aligned, >=2 grid steps."""
    target_block_bytes = 2 * 1024 * 1024
    b = max(1, target_block_bytes // (hw * itemsize))
    if planes > 8:
        # Keep at least two grid steps so v7x's two TensorCores both get work.
        b = min(b, (planes + 1) // 2)
    b = min(b, planes)
    if planes >= 8:
        b = max(8, (b // 8) * 8)  # align second-to-last block dim to 8
    return int(b)


def maxpool_op(x):
    """MaxPool2d(kernel_size=3, stride=1, padding=1) on an NCHW tensor."""
    N, C, H, W = x.shape
    planes, HW = N * C, H * W

    # Free reshape (collapses contiguous dims): lane axis becomes H*W.
    x2 = x.reshape(planes, HW)

    flat = jnp.arange(HW, dtype=jnp.int32)
    col_ids = (flat % W).reshape(1, HW)
    row_ids = (flat // W).reshape(1, HW)

    b = _pick_block_planes(planes, HW, x.dtype.itemsize)
    grid = ((planes + b - 1) // b,)

    out = pl.pallas_call(
        functools.partial(_maxpool3x3_kernel, H=H, W=W),
        out_shape=jax.ShapeDtypeStruct((planes, HW), x.dtype),
        grid=grid,
        in_specs=[
            pl.BlockSpec((1, HW), lambda i: (0, 0)),   # col ids (tiny, reused)
            pl.BlockSpec((1, HW), lambda i: (0, 0)),   # row ids (tiny, reused)
            pl.BlockSpec((b, HW), lambda i: (i, 0)),   # input plane-block
        ],
        out_specs=pl.BlockSpec((b, HW), lambda i: (i, 0)),
        compiler_params=pltpu.CompilerParams(
            dimension_semantics=("parallel",),
            vmem_limit_bytes=48 * 1024 * 1024,
        ),
    )(col_ids, row_ids, x2)
    return out.reshape(N, C, H, W)


if __name__ == "__main__":
    key = jax.random.PRNGKey(0)
    # Small NCHW shape consistent with the module's conv-style input.
    x = jax.random.normal(key, (2, 4, 16, 16), dtype=jnp.float32)

    y = jax.block_until_ready(maxpool_op(x))

    # Pure-JAX reference: max reduce-window with same-size output.
    ref = jax.lax.reduce_window(
        x, -jnp.inf, jax.lax.max,
        window_dimensions=(1, 1, 3, 3),
        window_strides=(1, 1, 1, 1),
        padding=((0, 0), (0, 0), (1, 1), (1, 1)),
    )
    assert y.shape == (2, 4, 16, 16)
    assert jnp.allclose(y, ref), "Pallas maxpool mismatch vs reference"

    print("KERNEL_OK")
</pallas_src>

<mosaic_0001>
module attributes {stable_mosaic.version = 11 : i64} {
  func.func @_maxpool3x3_kernel(%arg0: i32, %arg1: memref<1x256xi32, #tpu.memory_space<vmem>>, %arg2: memref<1x256xi32, #tpu.memory_space<vmem>>, %arg3: memref<8x256xf32, #tpu.memory_space<vmem>>, %arg4: memref<8x256xf32, #tpu.memory_space<vmem>>) attributes {dimension_semantics = [#tpu.dimension_semantics<parallel>], iteration_bounds = array<i64: 1>, scalar_prefetch = 0 : i64, scratch_operands = 0 : i64, tpu.core_type = #tpu.core_type<tc>, window_params = [{pipeline_mode = #tpu.pipeline_mode<synchronous>, transform_indices = @transform_0, window_bounds = array<i64: 1, 256>}, {pipeline_mode = #tpu.pipeline_mode<synchronous>, transform_indices = @transform_1, window_bounds = array<i64: 1, 256>}, {transform_indices = @transform_2, window_bounds = array<i64: 8, 256>}, {transform_indices = @transform_3, window_bounds = array<i64: 8, 256>}]} {
    %c0 = arith.constant 0 : index
    %c0_0 = arith.constant 0 : index
    %0 = vector.load %arg3[%c0, %c0_0] : memref<8x256xf32, #tpu.memory_space<vmem>>, vector<8x256xf32>
    %c0_1 = arith.constant 0 : index
    %c0_2 = arith.constant 0 : index
    %1 = vector.load %arg1[%c0_1, %c0_2] : memref<1x256xi32, #tpu.memory_space<vmem>>, vector<1x256xi32>
    %c0_3 = arith.constant 0 : index
    %c0_4 = arith.constant 0 : index
    %2 = vector.load %arg2[%c0_3, %c0_4] : memref<1x256xi32, #tpu.memory_space<vmem>>, vector<1x256xi32>
    %c0_i32 = arith.constant 0 : i32
    %3 = vector.broadcast %c0_i32 : i32 to vector<1x256xi32>
    %4 = arith.cmpi eq, %1, %3 : vector<1x256xi32>
    %5 = vector.extract_strided_slice %0 {offsets = [0, 255], sizes = [8, 1], strides = [1, 1]} : vector<8x256xf32> to vector<8x1xf32>
    %6 = vector.extract_strided_slice %0 {offsets = [0, 0], sizes = [8, 255], strides = [1, 1]} : vector<8x256xf32> to vector<8x255xf32>
    %7 = tpu.concatenate %5, %6 in 1 : vector<8x1xf32>, vector<8x255xf32> -> vector<8x256xf32>
    %cst = arith.constant 0xFF800000 : f32
    %8 = vector.shape_cast %4 : vector<1x256xi1> to vector<1x256xi1>
    %9 = vector.broadcast %8 : vector<1x256xi1> to vector<8x256xi1>
    %10 = vector.broadcast %cst : f32 to vector<8x256xf32>
    %11 = arith.select %9, %10, %7 : vector<8x256xi1>, vector<8x256xf32>
    %c15_i32 = arith.constant 15 : i32
    %12 = vector.broadcast %c15_i32 : i32 to vector<1x256xi32>
    %13 = arith.cmpi eq, %1, %12 : vector<1x256xi32>
    %14 = vector.extract_strided_slice %0 {offsets = [0, 1], sizes = [8, 255], strides = [1, 1]} : vector<8x256xf32> to vector<8x255xf32>
    %15 = vector.extract_strided_slice %0 {offsets = [0, 0], sizes = [8, 1], strides = [1, 1]} : vector<8x256xf32> to vector<8x1xf32>
    %16 = tpu.concatenate %14, %15 in 1 : vector<8x255xf32>, vector<8x1xf32> -> vector<8x256xf32>
    %cst_5 = arith.constant 0xFF800000 : f32
    %17 = vector.shape_cast %13 : vector<1x256xi1> to vector<1x256xi1>
    %18 = vector.broadcast %17 : vector<1x256xi1> to vector<8x256xi1>
    %19 = vector.broadcast %cst_5 : f32 to vector<8x256xf32>
    %20 = arith.select %18, %19, %16 : vector<8x256xi1>, vector<8x256xf32>
    %21 = arith.maximumf %11, %0 : vector<8x256xf32>
    %22 = arith.maximumf %21, %20 : vector<8x256xf32>
    %c0_i32_6 = arith.constant 0 : i32
    %23 = vector.broadcast %c0_i32_6 : i32 to vector<1x256xi32>
    %24 = arith.cmpi eq, %2, %23 : vector<1x256xi32>
    %25 = vector.extract_strided_slice %22 {offsets = [0, 240], sizes = [8, 16], strides = [1, 1]} : vector<8x256xf32> to vector<8x16xf32>
    %26 = vector.extract_strided_slice %22 {offsets = [0, 0], sizes = [8, 240], strides = [1, 1]} : vector<8x256xf32> to vector<8x240xf32>
    %27 = tpu.concatenate %25, %26 in 1 : vector<8x16xf32>, vector<8x240xf32> -> vector<8x256xf32>
    %cst_7 = arith.constant 0xFF800000 : f32
    %28 = vector.shape_cast %24 : vector<1x256xi1> to vector<1x256xi1>
    %29 = vector.broadcast %28 : vector<1x256xi1> to vector<8x256xi1>
    %30 = vector.broadcast %cst_7 : f32 to vector<8x256xf32>
    %31 = arith.select %29, %30, %27 : vector<8x256xi1>, vector<8x256xf32>
    %c15_i32_8 = arith.constant 15 : i32
    %32 = vector.broadcast %c15_i32_8 : i32 to vector<1x256xi32>
    %33 = arith.cmpi eq, %2, %32 : vector<1x256xi32>
    %34 = vector.extract_strided_slice %22 {offsets = [0, 16], sizes = [8, 240], strides = [1, 1]} : vector<8x256xf32> to vector<8x240xf32>
    %35 = vector.extract_strided_slice %22 {offsets = [0, 0], sizes = [8, 16], strides = [1, 1]} : vector<8x256xf32> to vector<8x16xf32>
    %36 = tpu.concatenate %34, %35 in 1 : vector<8x240xf32>, vector<8x16xf32> -> vector<8x256xf32>
    %cst_9 = arith.constant 0xFF800000 : f32
    %37 = vector.shape_cast %33 : vector<1x256xi1> to vector<1x256xi1>
    %38 = vector.broadcast %37 : vector<1x256xi1> to vector<8x256xi1>
    %39 = vector.broadcast %cst_9 : f32 to vector<8x256xf32>
    %40 = arith.select %38, %39, %36 : vector<8x256xi1>, vector<8x256xf32>
    %41 = arith.maximumf %31, %22 : vector<8x256xf32>
    %42 = arith.maximumf %41, %40 : vector<8x256xf32>
    %c0_10 = arith.constant 0 : index
    %c0_11 = arith.constant 0 : index
    %43 = vector.load %arg4[%c0_10, %c0_11] : memref<8x256xf32, #tpu.memory_space<vmem>>, vector<8x256xf32>
    tpu.vector_store %arg4[%c0_10, %c0_11], %42 {strides = array<i32>} : memref<8x256xf32, #tpu.memory_space<vmem>>, vector<8x256xf32>,
    return
  }
  func.func @transform_0(%arg0: i32) -> (i32, i32) {
    %c0_i32 = arith.constant 0 : i32
    %c0_i32_0 = arith.constant 0 : i32
    %c0_i32_1 = arith.constant 0 : i32
    return %c0_i32, %c0_i32_0 : i32, i32
  }
  func.func @transform_1(%arg0: i32) -> (i32, i32) {
    %c0_i32 = arith.constant 0 : i32
    %c0_i32_0 = arith.constant 0 : i32
    %c0_i32_1 = arith.constant 0 : i32
    return %c0_i32, %c0_i32_0 : i32, i32
  }
  func.func @transform_2(%arg0: i32) -> (i32, i32) {
    %c0_i32 = arith.constant 0 : i32
    %c0_i32_0 = arith.constant 0 : i32
    return %arg0, %c0_i32 : i32, i32
  }
  func.func @transform_3(%arg0: i32) -> (i32, i32) {
    %c0_i32 = arith.constant 0 : i32
    %c0_i32_0 = arith.constant 0 : i32
    return %arg0, %c0_i32 : i32, i32
  }
}

</mosaic_0001>

<llo_original>
// kernel: tpu_custom_call.1
$region0: #{tpu_custom_call.1}
  #allocation0 [shape = 'u32[]', space=smem, size = 0x4, offset = 0x4, fixed_abs, tag = 'smem constant byte address 0x4 - core index']
  #allocation1 [shape = 'u32[144,128]{1,0:T(1,128)}', space=vmem, size = 0x12000, scoped, tag = 'internal scratch']
  %s0 = inlined_call_operand.hbm [shape: s32[1,256], index: 0, kind: input, shape index: {}]
  %s1 = inlined_call_operand.vmem [shape: s32[1,256], index: 1, kind: input, shape index: {}]
  %s2 = inlined_call_operand.hbm [shape: f32[8,256], index: 2, kind: input, shape index: {}]
  %s3 = inlined_call_operand.hbm [shape: f32[8,256], index: 3, kind: output, shape index: {}]
  %s4 = sld [smem:[#allocation0]]
  $region30: #{tpu_custom_call.1} parent=0
    _
  %s6 = ssub.s32 1, %s4
  %s7 = scalar_select 0, %s6, %s4
  $region1: #{tpu_custom_call.1} parent=0
    #allocation2 [shape = 'u8[1024]{0}', space=vmem, size = 0x400, scoped, tag = 'input window, operand 0, single buffered']
    #allocation3 [shape = 's32[1]{0}', space=sflag, size = 0x4, scoped, tag = 'scoped memory for tpu_custom_call.1']
    #allocation4 [shape = 's32[1]{0}', space=sflag, size = 0x4, scoped, tag = 'scoped memory for tpu_custom_call.1']
    #allocation5 [shape = 'u8[8192]{0}', space=vmem, size = 0x2000, scoped, tag = 'input window, operand 2, single buffered']
    #allocation6 [shape = 's32[1]{0}', space=sflag, size = 0x4, scoped, tag = 'scoped memory for tpu_custom_call.1']
    #allocation7 [shape = 'u8[8192]{0}', space=vmem, size = 0x2000, scoped, tag = 'output window, operand 0, single buffered']
    %8 = vsyncpa [#allocation3], 0
    %9 = vsyncpa [#allocation6], 0
    %10 = vsyncpa [#allocation4], 0
    // Predicated region
    $region2: #{tpu_custom_call.1} parent=1 // pred_check
      _
    $region3: #{tpu_custom_call.1} parent=1 // pred_check_branch
      %12 = sbr.rel (0) target = $region5
    $region4: #{tpu_custom_call.1} parent=1 // pred_region
      %s14 = ssub.s32 32, 32
      %15 = vsyncadd [#allocation3], %s14
      %s17 = sshll.u32 [#allocation2], 4
      %s18 = int_to_ptr.vmem [resolvable:$true] %s17
      %20 = dma.hbm_to_vmem [thread:$0]  %s0, 32, %s18, [#allocation3]
    $region5: #{tpu_custom_call.1} parent=1 // pred_fallthru
      _
    // Predicated region
    $region6: #{tpu_custom_call.1} parent=1 // pred_check
      _
    $region7: #{tpu_custom_call.1} parent=1 // pred_check_branch
      %22 = sbr.rel (0) target = $region9
    $region8: #{tpu_custom_call.1} parent=1 // pred_region
      _
    $region9: #{tpu_custom_call.1} parent=1 // pred_fallthru
      _
    // Predicated region
    $region10: #{tpu_custom_call.1} parent=1 // pred_check
      _
    $region11: #{tpu_custom_call.1} parent=1 // pred_check_branch
      %24 = sbr.rel (0) target = $region13
    $region12: #{tpu_custom_call.1} parent=1 // pred_region
      %s26 = ssub.s32 256, 256
      %27 = vsyncadd [#allocation6], %s26
      %s29 = sshll.u32 [#allocation5], 4
      %s30 = int_to_ptr.vmem [resolvable:$true] %s29
      %32 = dma.hbm_to_vmem [thread:$0]  %s2, 256, %s30, [#allocation6]
    $region13: #{tpu_custom_call.1} parent=1 // pred_fallthru
      _
    // Predicated region
    $region14: #{tpu_custom_call.1} parent=1 // pred_check
      _
    $region15: #{tpu_custom_call.1} parent=1 // pred_check_branch
      %34 = sbr.rel (0) target = $region17
    $region16: #{tpu_custom_call.1} parent=1 // pred_region
      %35 = dma.done [#allocation3], 32
    $region17: #{tpu_custom_call.1} parent=1 // pred_fallthru
      _
    // Predicated region
    $region18: #{tpu_custom_call.1} parent=1 // pred_check
      _
    $region19: #{tpu_custom_call.1} parent=1 // pred_check_branch
      %37 = sbr.rel (0) target = $region21
    $region20: #{tpu_custom_call.1} parent=1 // pred_region
      %38 = dma.done [#allocation6], 256
    $region21: #{tpu_custom_call.1} parent=1 // pred_fallthru
      _
    %v39 = vld [vmem:[#allocation5] sm:$0xff]
    %v40 = vld [vmem:[#allocation5 + $0x8] sm:$0xff]
    %v41 = vld [vmem:[#allocation2] sm:$0x3]
    %v42 = vld [vmem:[%s1] sm:$0x3]
    %vm43 = vcmp.eq.s32.totalorder %v41, 0
    %45 = vrot.lane.b32.xlu0 %v40, 1
    %v46 = vpop.permute.xlu0 %45
    %49 = vrot.lane.b32.xlu0 %v39, 1
    %v50 = vpop.permute.xlu0 %49
    %vm51 = vcmask 7168
    %v52 = vsel %vm51, %v50, %v46
    %v55 = vsel %vm51, %v46, %v50
    %v56 = vsel %vm43, 1, 0
    %v57 = vlaneseq
    %v58 = vshrl.u32 %v57, 7
    %v59 = vsub.s32 0, %v58
    %v60 = vrot.slane %v56, %v59
    %v61 = vlaneseq
    %v62 = vshrl.u32 %v61, 7
    %v63 = vsub.s32 1, %v62
    %v64 = vrot.slane %v56, %v63
    %vm65 = vcmp.eq.s32.totalorder %v60, 1
    %vm66 = vcmp.eq.s32.totalorder %v64, 1
    %v67 = vsel %vm65, -inf, %v55
    %v68 = vsel %vm66, -inf, %v52
    %vm69 = vcmp.eq.s32.totalorder %v41, 15
    %70 = vrot.lane.b32.xlu0 %v39, 127
    %v71 = vpop.permute.xlu0 %70
    %72 = vrot.lane.b32.xlu0 %v40, 127
    %v73 = vpop.permute.xlu0 %72
    %vm74 = vcmask 1039360
    %v75 = vsel %vm74, %v71, %v73
    %v79 = vsel %vm74, %v73, %v71
    %v80 = vsel %vm69, 1, 0
    %v81 = vlaneseq
    %v82 = vshrl.u32 %v81, 7
    %v83 = vsub.s32 0, %v82
    %v84 = vrot.slane %v80, %v83
    %v85 = vlaneseq
    %v86 = vshrl.u32 %v85, 7
    %v87 = vsub.s32 1, %v86
    %v88 = vrot.slane %v80, %v87
    %vm89 = vcmp.eq.s32.totalorder %v84, 1
    %vm90 = vcmp.eq.s32.totalorder %v88, 1
    %v91 = vsel %vm89, -inf, %v75
    %v92 = vsel %vm90, -inf, %v79
    %v93 = vmax.f32 %v67, %v39
    %v94 = vmax.f32 %v68, %v40
    %v95 = vmax.f32 %v93, %v91
    %v96 = vmax.f32 %v94, %v92
    %vm97 = vcmp.eq.s32.totalorder %v42, 0
    %99 = vrot.lane.b32.xlu0 %v96, 16
    %v100 = vpop.permute.xlu0 %99
    %103 = vrot.lane.b32.xlu0 %v95, 16
    %v104 = vpop.permute.xlu0 %103
    %vm105 = vcmask 130048
    %v106 = vsel %vm105, %v104, %v100
    %v109 = vsel %vm105, %v100, %v104
    %v110 = vsel %vm97, 1, 0
    %v111 = vlaneseq
    %v112 = vshrl.u32 %v111, 7
    %v113 = vsub.s32 0, %v112
    %v114 = vrot.slane %v110, %v113
    %v115 = vlaneseq
    %v116 = vshrl.u32 %v115, 7
    %v117 = vsub.s32 1, %v116
    %v118 = vrot.slane %v110, %v117
    %vm119 = vcmp.eq.s32.totalorder %v114, 1
    %vm120 = vcmp.eq.s32.totalorder %v118, 1
    %v121 = vsel %vm119, -inf, %v109
    %v122 = vsel %vm120, -inf, %v106
    %vm123 = vcmp.eq.s32.totalorder %v42, 15
    %124 = vrot.lane.b32.xlu0 %v95, 112
    %v125 = vpop.permute.xlu0 %124
    %126 = vrot.lane.b32.xlu0 %v96, 112
    %v127 = vpop.permute.xlu0 %126
    %vm128 = vcmask 916480
    %v129 = vsel %vm128, %v125, %v127
    %v133 = vsel %vm128, %v127, %v125
    %v134 = vsel %vm123, 1, 0
    %v135 = vlaneseq
    %v136 = vshrl.u32 %v135, 7
    %v137 = vsub.s32 0, %v136
    %v138 = vrot.slane %v134, %v137
    %v139 = vlaneseq
    %v140 = vshrl.u32 %v139, 7
    %v141 = vsub.s32 1, %v140
    %v142 = vrot.slane %v134, %v141
    %vm143 = vcmp.eq.s32.totalorder %v138, 1
    %vm144 = vcmp.eq.s32.totalorder %v142, 1
    %v145 = vsel %vm143, -inf, %v129
    %v146 = vsel %vm144, -inf, %v133
    %v147 = vmax.f32 %v121, %v95
    %v148 = vmax.f32 %v122, %v96
    %v149 = vmax.f32 %v147, %v145
    %v150 = vmax.f32 %v148, %v146
    %151 = vst [vmem:[#allocation7] sm:$0xff] %v149
    %152 = vst [vmem:[#allocation7 + $0x8] sm:$0xff] %v150
    // Predicated region
    $region22: #{tpu_custom_call.1} parent=1 // pred_check
      _
    $region23: #{tpu_custom_call.1} parent=1 // pred_check_branch
      %154 = sbr.rel (0) target = $region25
    $region24: #{tpu_custom_call.1} parent=1 // pred_region
      %s156 = ssub.s32 256, 256
      %157 = vsyncadd [#allocation4], %s156
      %s159 = sshll.u32 [#allocation7], 4
      %s160 = int_to_ptr.vmem [resolvable:$true] %s159
      %162 = dma.vmem_to_hbm [thread:$0]  %s160, 256, %s3, [#allocation4]
    $region25: #{tpu_custom_call.1} parent=1 // pred_fallthru
      _
    // Predicated region
    $region26: #{tpu_custom_call.1} parent=1 // pred_check
      _
    $region27: #{tpu_custom_call.1} parent=1 // pred_check_branch
      %164 = sbr.rel (0) target = $region29
    $region28: #{tpu_custom_call.1} parent=1 // pred_region
      %165 = dma.done [#allocation4], 256
    $region29: #{tpu_custom_call.1} parent=1 // pred_fallthru
      _
    %166 = vsyncpa [#allocation3], 1
    %167 = vsyncpa [#allocation6], 1
    %168 = vsyncpa [#allocation4], 1

</llo_original>
